<compile_context>
chip_gen: v7x
topology: tpu7x:2x2x1
jax: 0.10.0
libtpu: 0.0.40
codegen_flags: <defaults>
</compile_context>

<pallas_src>
import numpy as np
import jax
import jax.numpy as jnp
from jax.experimental import pallas as pl
from jax.experimental.pallas import tpu as pltpu

# ----- model / problem sizes (small, deterministic) -----
N = 16            # number of graph nodes
IN_DIM = 16
HIDDEN = 32
LANES = 128       # lane-dense output feature width
LAYER_NUM = 2     # host-side fold below hardcodes 2 GraphConv layers
SAMPLE_SIZE = 4
TAU = 0.5
LAM = 0.1
LAMBDA_LOSS = 1.0
NUM_MLP = 0       # -> projected_rep = normalize(MLP_emb); MLP_generator not needed
EPS_NORM = 1e-12  # torch.nn.functional.normalize eps
EPS_BN = 1e-5     # BatchNorm1d eps


def _l2_normalize(x):
    # torch F.normalize(p=2): x / max(||x||, eps)  ==  x * rsqrt(max(sumsq, eps^2))
    ss = jnp.sum(x * x, axis=-1, keepdims=True)
    return x * jax.lax.rsqrt(jnp.maximum(ss, EPS_NORM * EPS_NORM))


# ---------------------------------------------------------------------------
# Fused kernel: folded 2-layer GraphConv + target MLP + contrastive loss
# ---------------------------------------------------------------------------
def fused_kernel(nd_ref, wcat_ref, wm2_ref, pvec_ref, gcb_ref, mlp_ref, loss_ref):
    nd = nd_ref[...]                                   # [N, 4N] f32
    h_bf = nd[:, 0:N].astype(jnp.bfloat16)             # node features      [N, IN_DIM]
    a2_bf = nd[:, N:2 * N].astype(jnp.bfloat16)        # A_hat @ A_hat      [N, N]
    c_pos = nd[:, 2 * N:3 * N]                         # positive counts    [N, N]
    c_den = nd[:, 3 * N:4 * N]                         # c_pos + LAM*c_neg  [N, N]

    # One MXU pass for both K=IN_DIM products: hw = h @ [W1W2 | Wm1]
    hw = jnp.dot(h_bf, wcat_ref[...], preferred_element_type=jnp.float32)  # [N, 2*LANES]

    # --- folded GraphConv pair:  A^2 (h (W1 W2)) + [rowsum(A)(b1 W2) + b2] ---
    z = jnp.dot(a2_bf, hw[:, :LANES].astype(jnp.bfloat16),
                preferred_element_type=jnp.float32) + gcb_ref[...]
    gnn = _l2_normalize(z)                             # [N, LANES] (cols >= HIDDEN are 0)

    # --- encoder_target MLP: Linear -> BatchNorm1d (batch stats) -> ReLU -> Linear ---
    bm1 = pvec_ref[0:1, :]
    gamma = pvec_ref[1:2, :]
    beta = pvec_ref[2:3, :]
    bm2 = pvec_ref[3:4, :]

    t0 = hw[:, LANES:] + bm1                           # [N, LANES]
    inv_n = 1.0 / N
    s1 = jnp.sum(t0, axis=0, keepdims=True)            # one pass: sum and sum-of-squares
    s2 = jnp.sum(t0 * t0, axis=0, keepdims=True)
    mean = s1 * inv_n
    var = jnp.maximum(s2 * inv_n - mean * mean, 0.0)   # biased var (torch train-mode BN)
    t1 = (t0 - mean) * jax.lax.rsqrt(var + EPS_BN) * gamma + beta
    t1 = jnp.maximum(t1, 0.0)                          # ReLU
    t2 = jnp.dot(t1[:, :HIDDEN].astype(jnp.bfloat16), wm2_ref[...],
                 preferred_element_type=jnp.float32) + bm2
    mlp = _l2_normalize(t2)
    mlp_ref[...] = mlp

    # num_MLP == 0: projected_rep = normalize(MLP_emb) == MLP_emb (already unit-norm)
    proj = mlp

    # --- contrastive loss: one NT MXU matmul + count-weighted exp sums ----------
    # sims[i, j] = <proj_i, gnn_j> / tau   (NT transpose negligible at [N,128];
    # at larger sizes produce gnn pre-transposed to avoid the XLU transpose).
    sims = jax.lax.dot_general(proj.astype(jnp.bfloat16), gnn.astype(jnp.bfloat16),
                               (((1,), (1,)), ((), ())),
                               preferred_element_type=jnp.float32) * (1.0 / TAU)
    # |sims| <= 1/tau since proj/gnn are unit-norm -> exp is safe without max-sub.
    e = jnp.exp(sims)                                                  # [N, N]
    pos_exp = jnp.sum(c_pos * e, axis=-1, keepdims=True)               # [N, 1]
    den_exp = jnp.sum(c_den * e, axis=-1, keepdims=True)               # [N, 1]
    # TODO(synk): `contrastive_loss` is not defined in the reference source; a
    # standard InfoNCE-style positive/negative formulation is implemented:
    #   loss_i = -log( pos / (pos + LAM * neg) ) = log(den) - log(pos).
    loss_i = jnp.log(den_exp) - jnp.log(pos_exp)                       # [N, 1]
    loss_ref[...] = LAMBDA_LOSS * jnp.mean(loss_i, keepdims=True)      # (1, 1)


# ---------------------------------------------------------------------------
# Wrapper
# ---------------------------------------------------------------------------
_VMEM = pl.BlockSpec(memory_space=pltpu.MemorySpace.VMEM)


@jax.jit
def fused_forward(nd, wcat, wm2_p, pvec, gcb_p):
    mlp_p, loss = pl.pallas_call(
        fused_kernel,
        out_shape=(jax.ShapeDtypeStruct((N, LANES), jnp.float32),
                   jax.ShapeDtypeStruct((1, 1), jnp.float32)),
        in_specs=[_VMEM, _VMEM, _VMEM, _VMEM, _VMEM],
        out_specs=(_VMEM, _VMEM),
        compiler_params=pltpu.CompilerParams(vmem_limit_bytes=16 * 1024 * 1024),
    )(nd, wcat, wm2_p, pvec, gcb_p)
    return loss[0, 0], mlp_p[:, :HIDDEN]


# ---------------------------------------------------------------------------
# Host-side glue: graph construction, parameter init, sampling, folding, packing
# ---------------------------------------------------------------------------
def build_graph():
    rng = np.random.RandomState(0)
    A = (rng.rand(N, N) < 0.3).astype(np.float32)
    A = np.maximum(A, A.T)
    np.fill_diagonal(A, 1.0)                     # self loops -> non-empty neighbor lists
    deg = A.sum(axis=1)
    dinv = 1.0 / np.sqrt(deg)
    a_hat = dinv[:, None] * A * dinv[None, :]
    neighbor_dict = {i: list(np.nonzero(A[i])[0].astype(int)) for i in range(N)}
    return jnp.asarray(a_hat, jnp.float32), neighbor_dict


def init_params(key):
    def linear(k, fan_in, fan_out):
        bound = 1.0 / np.sqrt(fan_in)
        kw, kb = jax.random.split(k)
        w = jax.random.uniform(kw, (fan_in, fan_out), jnp.float32, -bound, bound)
        b = jax.random.uniform(kb, (1, fan_out), jnp.float32, -bound, bound)
        return w, b

    k1, k2, k3, k4 = jax.random.split(key, 4)
    w1, b1 = linear(k1, IN_DIM, HIDDEN)      # GraphConv 1
    w2, b2 = linear(k2, HIDDEN, HIDDEN)      # GraphConv 2
    wm1, bm1 = linear(k3, IN_DIM, HIDDEN)    # encoder_target layer1
    wm2, bm2 = linear(k4, HIDDEN, HIDDEN)    # encoder_target layer2
    gamma = jnp.ones((1, HIDDEN), jnp.float32)   # BatchNorm1d weight init
    beta = jnp.zeros((1, HIDDEN), jnp.float32)   # BatchNorm1d bias init
    return (w1, b1, w2, b2, wm1, bm1, gamma, beta, wm2, bm2)


def sample_count_matrices(neighbor_dict):
    # Replicates get_emb / sample_neighbors (deterministic RNG), converted to
    # per-node occurrence-count matrices so the in-kernel "gather" becomes a
    # count-weighted sum over exp(sims) — equal to summing exp over the samples.
    rng = np.random.RandomState(1)
    c_pos = np.zeros((N, N), np.float32)
    c_neg = np.zeros((N, N), np.float32)
    all_nodes = np.arange(N)
    for i in range(N):
        nbrs = list(neighbor_dict[i])
        if len(nbrs) < SAMPLE_SIZE:
            nbrs = nbrs + rng.choice(nbrs, SAMPLE_SIZE - len(nbrs)).tolist()
        else:
            nbrs = rng.choice(nbrs, SAMPLE_SIZE, replace=False).tolist()
        for j in nbrs[:SAMPLE_SIZE]:
            c_pos[i, int(j)] += 1.0
        for j in rng.choice(all_nodes, SAMPLE_SIZE, replace=False):
            c_neg[i, int(j)] += 1.0
    return jnp.asarray(c_pos), jnp.asarray(c_neg)


def pad_to(x, shape):
    pads = [(0, s - d) for d, s in zip(x.shape, shape)]
    return jnp.pad(x, pads)


if __name__ == "__main__":
    key = jax.random.PRNGKey(0)
    k_feat, k_params = jax.random.split(key)

    a_hat, neighbor_dict = build_graph()
    h = jax.random.normal(k_feat, (N, IN_DIM), jnp.float32)
    w1, b1, w2, b2, wm1, bm1, gamma, beta, wm2, bm2 = init_params(k_params)

    # One-time algebraic fold of the two linear GraphConv layers:
    #   h2 = A^2 @ h @ (W1 W2) + rowsum(A) * (b1 W2) + b2
    a2 = a_hat @ a_hat                                        # [N, N]
    w12 = w1 @ w2                                             # [IN_DIM, HIDDEN]
    gcb = a_hat.sum(axis=1, keepdims=True) @ (b1 @ w2) + b2   # [N, HIDDEN]

    c_pos, c_neg = sample_count_matrices(neighbor_dict)       # [N, N] each
    c_den = c_pos + LAM * c_neg                               # combined denominator counts

    # ---- operand packing (5 operands total) ----
    # node-major block: [ h | A^2 | c_pos | c_den ]  -> [N, 4N], K dims natural
    nd = jnp.concatenate([h, a2, c_pos, c_den], axis=1).astype(jnp.float32)
    # merged h-side weights (bf16 MXU operands), output axes padded to 128 lanes
    wcat = jnp.concatenate([pad_to(w12, (IN_DIM, LANES)),
                            pad_to(wm1, (IN_DIM, LANES))], axis=1).astype(jnp.bfloat16)
    wm2_p = pad_to(wm2, (HIDDEN, LANES)).astype(jnp.bfloat16)     # K = HIDDEN natural
    # per-feature param block: rows = bm1, gamma, beta, bm2  -> one [8, 128] operand
    pvec = jnp.concatenate(
        [pad_to(bm1, (1, LANES)), pad_to(gamma, (1, LANES)),
         pad_to(beta, (1, LANES)), pad_to(bm2, (1, LANES)),
         jnp.zeros((4, LANES), jnp.float32)], axis=0)
    gcb_p = pad_to(gcb, (N, LANES))

    loss, mlp_emb = fused_forward(nd, wcat, wm2_p, pvec, gcb_p)
    jax.block_until_ready((loss, mlp_emb))

    assert mlp_emb.shape == (N, HIDDEN)
    assert loss.shape == ()
    assert bool(jnp.isfinite(loss))
    print("KERNEL_OK")
</pallas_src>

<mosaic_0001>
module attributes {stable_mosaic.version = 11 : i64} {
  func.func @fused_kernel(%arg0: memref<16x64xf32, #tpu.memory_space<vmem>>, %arg1: memref<16x256xbf16, #tpu.memory_space<vmem>>, %arg2: memref<32x128xbf16, #tpu.memory_space<vmem>>, %arg3: memref<8x128xf32, #tpu.memory_space<vmem>>, %arg4: memref<16x128xf32, #tpu.memory_space<vmem>>, %arg5: memref<16x128xf32, #tpu.memory_space<vmem>>, %arg6: memref<1x1xf32, #tpu.memory_space<vmem>>) attributes {dimension_semantics = [], scalar_prefetch = 0 : i64, scratch_operands = 0 : i64, tpu.core_type = #tpu.core_type<tc>} {
    %c0 = arith.constant 0 : index
    %c0_0 = arith.constant 0 : index
    %0 = vector.load %arg0[%c0, %c0_0] : memref<16x64xf32, #tpu.memory_space<vmem>>, vector<16x64xf32>
    %1 = vector.extract_strided_slice %0 {offsets = [0, 0], sizes = [16, 16], strides = [1, 1]} : vector<16x64xf32> to vector<16x16xf32>
    %2 = arith.truncf %1 : vector<16x16xf32> to vector<16x16xbf16>
    %3 = vector.extract_strided_slice %0 {offsets = [0, 16], sizes = [16, 16], strides = [1, 1]} : vector<16x64xf32> to vector<16x16xf32>
    %4 = arith.truncf %3 : vector<16x16xf32> to vector<16x16xbf16>
    %5 = vector.extract_strided_slice %0 {offsets = [0, 32], sizes = [16, 16], strides = [1, 1]} : vector<16x64xf32> to vector<16x16xf32>
    %6 = vector.extract_strided_slice %0 {offsets = [0, 48], sizes = [16, 16], strides = [1, 1]} : vector<16x64xf32> to vector<16x16xf32>
    %c0_1 = arith.constant 0 : index
    %c0_2 = arith.constant 0 : index
    %7 = vector.load %arg1[%c0_1, %c0_2] : memref<16x256xbf16, #tpu.memory_space<vmem>>, vector<16x256xbf16>
    %cst = arith.constant dense<0.000000e+00> : vector<16x256xf32>
    %8 = tpu.matmul %2, %7, %cst {dimension_numbers = #tpu.dot_dimension_numbers<[1], [0], [0], [1], [0, 0, 1, 1], [], []>} : vector<16x16xbf16>, vector<16x256xbf16>, vector<16x256xf32> -> vector<16x256xf32>
    %9 = vector.extract_strided_slice %8 {offsets = [0, 0], sizes = [16, 128], strides = [1, 1]} : vector<16x256xf32> to vector<16x128xf32>
    %10 = arith.truncf %9 : vector<16x128xf32> to vector<16x128xbf16>
    %cst_3 = arith.constant dense<0.000000e+00> : vector<16x128xf32>
    %11 = tpu.matmul %4, %10, %cst_3 {dimension_numbers = #tpu.dot_dimension_numbers<[1], [0], [0], [1], [0, 0, 1, 1], [], []>} : vector<16x16xbf16>, vector<16x128xbf16>, vector<16x128xf32> -> vector<16x128xf32>
    %c0_4 = arith.constant 0 : index
    %c0_5 = arith.constant 0 : index
    %12 = vector.load %arg4[%c0_4, %c0_5] : memref<16x128xf32, #tpu.memory_space<vmem>>, vector<16x128xf32>
    %13 = arith.addf %11, %12 : vector<16x128xf32>
    %14 = arith.mulf %13, %13 : vector<16x128xf32>
    %cst_6 = arith.constant dense<0.000000e+00> : vector<16xf32>
    %15 = vector.multi_reduction <add>, %14, %cst_6 [1] : vector<16x128xf32> to vector<16xf32>
    %16 = vector.shape_cast %15 : vector<16xf32> to vector<16x1xf32>
    %cst_7 = arith.constant 1.000000e-24 : f32
    %17 = vector.broadcast %cst_7 : f32 to vector<16x1xf32>
    %18 = arith.maximumf %16, %17 : vector<16x1xf32>
    %19 = math.rsqrt %18 : vector<16x1xf32>
    %20 = vector.broadcast %19 : vector<16x1xf32> to vector<16x128xf32>
    %21 = arith.mulf %13, %20 : vector<16x128xf32>
    %c0_8 = arith.constant 0 : index
    %c0_9 = arith.constant 0 : index
    %22 = vector.load %arg3[%c0_8, %c0_9] : memref<8x128xf32, #tpu.memory_space<vmem>>, vector<1x128xf32>
    %c1 = arith.constant 1 : index
    %c0_10 = arith.constant 0 : index
    %23 = vector.load %arg3[%c1, %c0_10] : memref<8x128xf32, #tpu.memory_space<vmem>>, vector<1x128xf32>
    %c2 = arith.constant 2 : index
    %c0_11 = arith.constant 0 : index
    %24 = vector.load %arg3[%c2, %c0_11] : memref<8x128xf32, #tpu.memory_space<vmem>>, vector<1x128xf32>
    %c3 = arith.constant 3 : index
    %c0_12 = arith.constant 0 : index
    %25 = vector.load %arg3[%c3, %c0_12] : memref<8x128xf32, #tpu.memory_space<vmem>>, vector<1x128xf32>
    %26 = vector.extract_strided_slice %8 {offsets = [0, 128], sizes = [16, 128], strides = [1, 1]} : vector<16x256xf32> to vector<16x128xf32>
    %27 = vector.broadcast %22 : vector<1x128xf32> to vector<16x128xf32>
    %28 = arith.addf %26, %27 : vector<16x128xf32>
    %cst_13 = arith.constant dense<0.000000e+00> : vector<128xf32>
    %29 = vector.multi_reduction <add>, %28, %cst_13 [0] : vector<16x128xf32> to vector<128xf32>
    %30 = vector.shape_cast %29 : vector<128xf32> to vector<1x128xf32>
    %31 = arith.mulf %28, %28 : vector<16x128xf32>
    %cst_14 = arith.constant dense<0.000000e+00> : vector<128xf32>
    %32 = vector.multi_reduction <add>, %31, %cst_14 [0] : vector<16x128xf32> to vector<128xf32>
    %33 = vector.shape_cast %32 : vector<128xf32> to vector<1x128xf32>
    %cst_15 = arith.constant 6.250000e-02 : f32
    %34 = vector.broadcast %cst_15 : f32 to vector<1x128xf32>
    %35 = arith.mulf %30, %34 : vector<1x128xf32>
    %cst_16 = arith.constant 6.250000e-02 : f32
    %36 = vector.broadcast %cst_16 : f32 to vector<1x128xf32>
    %37 = arith.mulf %33, %36 : vector<1x128xf32>
    %38 = arith.mulf %35, %35 : vector<1x128xf32>
    %39 = arith.subf %37, %38 : vector<1x128xf32>
    %cst_17 = arith.constant 0.000000e+00 : f32
    %40 = vector.broadcast %cst_17 : f32 to vector<1x128xf32>
    %41 = arith.maximumf %39, %40 : vector<1x128xf32>
    %42 = vector.broadcast %35 : vector<1x128xf32> to vector<16x128xf32>
    %43 = arith.subf %28, %42 : vector<16x128xf32>
    %cst_18 = arith.constant 9.99999974E-6 : f32
    %44 = vector.broadcast %cst_18 : f32 to vector<1x128xf32>
    %45 = arith.addf %41, %44 : vector<1x128xf32>
    %46 = math.rsqrt %45 : vector<1x128xf32>
    %47 = vector.broadcast %46 : vector<1x128xf32> to vector<16x128xf32>
    %48 = arith.mulf %43, %47 : vector<16x128xf32>
    %49 = vector.broadcast %23 : vector<1x128xf32> to vector<16x128xf32>
    %50 = arith.mulf %48, %49 : vector<16x128xf32>
    %51 = vector.broadcast %24 : vector<1x128xf32> to vector<16x128xf32>
    %52 = arith.addf %50, %51 : vector<16x128xf32>
    %cst_19 = arith.constant 0.000000e+00 : f32
    %53 = vector.broadcast %cst_19 : f32 to vector<16x128xf32>
    %54 = arith.maximumf %52, %53 : vector<16x128xf32>
    %55 = vector.extract_strided_slice %54 {offsets = [0, 0], sizes = [16, 32], strides = [1, 1]} : vector<16x128xf32> to vector<16x32xf32>
    %56 = arith.truncf %55 : vector<16x32xf32> to vector<16x32xbf16>
    %c0_20 = arith.constant 0 : index
    %c0_21 = arith.constant 0 : index
    %57 = vector.load %arg2[%c0_20, %c0_21] : memref<32x128xbf16, #tpu.memory_space<vmem>>, vector<32x128xbf16>
    %cst_22 = arith.constant dense<0.000000e+00> : vector<16x128xf32>
    %58 = tpu.matmul %56, %57, %cst_22 {dimension_numbers = #tpu.dot_dimension_numbers<[1], [0], [0], [1], [0, 0, 1, 1], [], []>} : vector<16x32xbf16>, vector<32x128xbf16>, vector<16x128xf32> -> vector<16x128xf32>
    %59 = vector.broadcast %25 : vector<1x128xf32> to vector<16x128xf32>
    %60 = arith.addf %58, %59 : vector<16x128xf32>
    %61 = arith.mulf %60, %60 : vector<16x128xf32>
    %cst_23 = arith.constant dense<0.000000e+00> : vector<16xf32>
    %62 = vector.multi_reduction <add>, %61, %cst_23 [1] : vector<16x128xf32> to vector<16xf32>
    %63 = vector.shape_cast %62 : vector<16xf32> to vector<16x1xf32>
    %cst_24 = arith.constant 1.000000e-24 : f32
    %64 = vector.broadcast %cst_24 : f32 to vector<16x1xf32>
    %65 = arith.maximumf %63, %64 : vector<16x1xf32>
    %66 = math.rsqrt %65 : vector<16x1xf32>
    %67 = vector.broadcast %66 : vector<16x1xf32> to vector<16x128xf32>
    %68 = arith.mulf %60, %67 : vector<16x128xf32>
    %c0_25 = arith.constant 0 : index
    %c0_26 = arith.constant 0 : index
    %69 = vector.load %arg5[%c0_25, %c0_26] : memref<16x128xf32, #tpu.memory_space<vmem>>, vector<16x128xf32>
    tpu.vector_store %arg5[%c0_25, %c0_26], %68 {strides = array<i32>} : memref<16x128xf32, #tpu.memory_space<vmem>>, vector<16x128xf32>,
    %70 = arith.truncf %68 : vector<16x128xf32> to vector<16x128xbf16>
    %71 = arith.truncf %21 : vector<16x128xf32> to vector<16x128xbf16>
    %cst_27 = arith.constant dense<0.000000e+00> : vector<16x16xf32>
    %72 = tpu.matmul %70, %71, %cst_27 {dimension_numbers = #tpu.dot_dimension_numbers<[1], [1], [0], [0], [0, 0, 1, 0], [], []>} : vector<16x128xbf16>, vector<16x128xbf16>, vector<16x16xf32> -> vector<16x16xf32>
    %cst_28 = arith.constant 2.000000e+00 : f32
    %73 = vector.broadcast %cst_28 : f32 to vector<16x16xf32>
    %74 = arith.mulf %72, %73 : vector<16x16xf32>
    %75 = math.exp %74 : vector<16x16xf32>
    %76 = arith.mulf %5, %75 : vector<16x16xf32>
    %cst_29 = arith.constant dense<0.000000e+00> : vector<16xf32>
    %77 = vector.multi_reduction <add>, %76, %cst_29 [1] : vector<16x16xf32> to vector<16xf32>
    %78 = vector.shape_cast %77 : vector<16xf32> to vector<16x1xf32>
    %79 = arith.mulf %6, %75 : vector<16x16xf32>
    %cst_30 = arith.constant dense<0.000000e+00> : vector<16xf32>
    %80 = vector.multi_reduction <add>, %79, %cst_30 [1] : vector<16x16xf32> to vector<16xf32>
    %81 = vector.shape_cast %80 : vector<16xf32> to vector<16x1xf32>
    %82 = math.log %81 : vector<16x1xf32>
    %83 = math.log %78 : vector<16x1xf32>
    %84 = arith.subf %82, %83 : vector<16x1xf32>
    %85 = vector.shape_cast %84 : vector<16x1xf32> to vector<1x16x1xf32>
    %cst_31 = arith.constant dense<0.000000e+00> : vector<1xf32>
    %86 = vector.multi_reduction <add>, %85, %cst_31 [1, 2] : vector<1x16x1xf32> to vector<1xf32>
    %87 = vector.shape_cast %86 : vector<1xf32> to vector<1x1x1xf32>
    %88 = vector.extract %87[0, 0, 0] : f32 from vector<1x1x1xf32>
    %89 = vector.broadcast %88 : f32 to vector<1x1xf32>
    %cst_32 = arith.constant 1.600000e+01 : f32
    %90 = vector.broadcast %cst_32 : f32 to vector<1x1xf32>
    %91 = arith.divf %89, %90 : vector<1x1xf32>
    %cst_33 = arith.constant 1.000000e+00 : f32
    %92 = vector.broadcast %cst_33 : f32 to vector<1x1xf32>
    %93 = arith.mulf %92, %91 : vector<1x1xf32>
    %c0_34 = arith.constant 0 : index
    %c0_35 = arith.constant 0 : index
    %94 = vector.load %arg6[%c0_34, %c0_35] : memref<1x1xf32, #tpu.memory_space<vmem>>, vector<1x1xf32>
    tpu.vector_store %arg6[%c0_34, %c0_35], %93 {strides = array<i32>} : memref<1x1xf32, #tpu.memory_space<vmem>>, vector<1x1xf32>,
    return
  }
}

</mosaic_0001>

<llo_original>
// kernel: fused_forward.1
$region0: #{fused_forward.1}
  #allocation0 [shape = 'u32[]', space=smem, size = 0x4, offset = 0x4, fixed_abs, tag = 'smem constant byte address 0x4 - core index']
  #allocation1 [shape = 'u32[144,128]{1,0:T(1,128)}', space=vmem, size = 0x12000, scoped, tag = 'internal scratch']
  %s0 = inlined_call_operand.hbm [shape: f32[16,64], index: 0, kind: input, shape index: {}]
  %s1 = inlined_call_operand.hbm [shape: bf16[16,256], index: 1, kind: input, shape index: {}]
  %s2 = inlined_call_operand.hbm [shape: bf16[32,128], index: 2, kind: input, shape index: {}]
  %s3 = inlined_call_operand.vmem [shape: f32[8,128], index: 3, kind: input, shape index: {}]
  %s4 = inlined_call_operand.hbm [shape: f32[16,128], index: 4, kind: input, shape index: {}]
  %s5 = inlined_call_operand.hbm [shape: f32[16,128], index: 5, kind: output, shape index: {0}]
  %s6 = inlined_call_operand.hbm [shape: f32[1,1], index: 6, kind: output, shape index: {1}]
  %7 = xla_tuple %s5, %s6
  %s8 = sld [smem:[#allocation0]]
  $region54: #{fused_forward.1} parent=0
    _
  %s10 = ssub.s32 1, %s8
  %s11 = scalar_select 0, %s10, %s8
  $region1: #{fused_forward.1} parent=0
    #allocation2 [shape = 'u8[8192]{0}', space=vmem, size = 0x2000, scoped, tag = 'input window, operand 0, single buffered']
    #allocation3 [shape = 's32[1]{0}', space=sflag, size = 0x4, scoped, tag = 'scoped memory for fused_forward.1']
    #allocation4 [shape = 's32[1]{0}', space=sflag, size = 0x4, scoped, tag = 'scoped memory for fused_forward.1']
    #allocation5 [shape = 'u8[8192]{0}', space=vmem, size = 0x2000, scoped, tag = 'input window, operand 1, single buffered']
    #allocation6 [shape = 's32[1]{0}', space=sflag, size = 0x4, scoped, tag = 'scoped memory for fused_forward.1']
    #allocation7 [shape = 'u8[8192]{0}', space=vmem, size = 0x2000, scoped, tag = 'input window, operand 2, single buffered']
    #allocation8 [shape = 'u8[8192]{0}', space=vmem, size = 0x2000, scoped, tag = 'input window, operand 4, single buffered']
    #allocation9 [shape = 's32[1]{0}', space=sflag, size = 0x4, scoped, tag = 'scoped memory for fused_forward.1']
    #allocation10 [shape = 'u8[8192]{0}', space=vmem, size = 0x2000, scoped, tag = 'output window, operand 0, single buffered']
    #allocation11 [shape = 'u8[512]{0}', space=vmem, size = 0x400, scoped, tag = 'output window, operand 1, single buffered']
    #allocation12 [shape = 's32[1]{0}', space=sflag, size = 0x4, scoped, tag = 'scoped memory for fused_forward.1']
    %12 = vsyncpa [#allocation3], 0
    %13 = vsyncpa [#allocation6], 0
    %14 = vsyncpa [#allocation9], 0
    %15 = vsyncpa [#allocation4], 0
    %16 = vsyncpa [#allocation12], 0
    // Predicated region
    $region2: #{fused_forward.1} parent=1 // pred_check
      _
    $region3: #{fused_forward.1} parent=1 // pred_check_branch
      %18 = sbr.rel (0) target = $region5
    $region4: #{fused_forward.1} parent=1 // pred_region
      %s20 = ssub.s32 256, 256
      %21 = vsyncadd [#allocation3], %s20
      %s22 = sshll.u32 [#allocation2], 4
      %s23 = int_to_ptr.vmem [resolvable:$true] %s22
      %28 = dma.hbm_to_vmem [thread:$0]  %s0, 256, %s23, [#allocation3], 128, 128, 8
    $region5: #{fused_forward.1} parent=1 // pred_fallthru
      _
    // Predicated region
    $region6: #{fused_forward.1} parent=1 // pred_check
      _
    $region7: #{fused_forward.1} parent=1 // pred_check_branch
      %30 = sbr.rel (0) target = $region9
    $region8: #{fused_forward.1} parent=1 // pred_region
      %s32 = ssub.s32 256, 256
      %33 = vsyncadd [#allocation6], %s32
      %s34 = sshll.u32 [#allocation5], 4
      %s35 = int_to_ptr.vmem [resolvable:$true] %s34
      %40 = dma.hbm_to_vmem [thread:$0]  %s1, 256, %s35, [#allocation6], 128, 128, 8
    $region9: #{fused_forward.1} parent=1 // pred_fallthru
      _
    // Predicated region
    $region10: #{fused_forward.1} parent=1 // pred_check
      _
    $region11: #{fused_forward.1} parent=1 // pred_check_branch
      %42 = sbr.rel (0) target = $region13
    $region12: #{fused_forward.1} parent=1 // pred_region
      %s44 = ssub.s32 256, 256
      %45 = vsyncadd [#allocation6], %s44
      %s46 = sshll.u32 [#allocation7], 4
      %s47 = int_to_ptr.vmem [resolvable:$true] %s46
      %52 = dma.hbm_to_vmem [thread:$0]  %s2, 256, %s47, [#allocation6], 64, 64, 4
    $region13: #{fused_forward.1} parent=1 // pred_fallthru
      _
    // Predicated region
    $region14: #{fused_forward.1} parent=1 // pred_check
      _
    $region15: #{fused_forward.1} parent=1 // pred_check_branch
      %54 = sbr.rel (0) target = $region17
    $region16: #{fused_forward.1} parent=1 // pred_region
      _
    $region17: #{fused_forward.1} parent=1 // pred_fallthru
      _
    // Predicated region
    $region18: #{fused_forward.1} parent=1 // pred_check
      _
    $region19: #{fused_forward.1} parent=1 // pred_check_branch
      %56 = sbr.rel (0) target = $region21
    $region20: #{fused_forward.1} parent=1 // pred_region
      %s58 = ssub.s32 256, 256
      %59 = vsyncadd [#allocation9], %s58
      %s60 = sshll.u32 [#allocation8], 4
      %s61 = int_to_ptr.vmem [resolvable:$true] %s60
      %66 = dma.hbm_to_vmem [thread:$0]  %s4, 256, %s61, [#allocation9], 128, 128, 8
    $region21: #{fused_forward.1} parent=1 // pred_fallthru
      _
    // Predicated region
    $region22: #{fused_forward.1} parent=1 // pred_check
      _
    $region23: #{fused_forward.1} parent=1 // pred_check_branch
      %68 = sbr.rel (0) target = $region25
    $region24: #{fused_forward.1} parent=1 // pred_region
      %69 = dma.done [#allocation3], 256
    $region25: #{fused_forward.1} parent=1 // pred_fallthru
      _
    // Predicated region
    $region26: #{fused_forward.1} parent=1 // pred_check
      _
    $region27: #{fused_forward.1} parent=1 // pred_check_branch
      %71 = sbr.rel (0) target = $region29
    $region28: #{fused_forward.1} parent=1 // pred_region
      %72 = dma.done [#allocation6], 256
    $region29: #{fused_forward.1} parent=1 // pred_fallthru
      _
    // Predicated region
    $region30: #{fused_forward.1} parent=1 // pred_check
      _
    $region31: #{fused_forward.1} parent=1 // pred_check_branch
      %74 = sbr.rel (0) target = $region33
    $region32: #{fused_forward.1} parent=1 // pred_region
      %75 = dma.done [#allocation6], 256
    $region33: #{fused_forward.1} parent=1 // pred_fallthru
      _
    // Predicated region
    $region34: #{fused_forward.1} parent=1 // pred_check
      _
    $region35: #{fused_forward.1} parent=1 // pred_check_branch
      %77 = sbr.rel (0) target = $region37
    $region36: #{fused_forward.1} parent=1 // pred_region
      %78 = dma.done [#allocation9], 256
    $region37: #{fused_forward.1} parent=1 // pred_fallthru
      _
    %v80 = vld [vmem:[#allocation2] sm:$0xff]
    %v81 = vld [vmem:[#allocation2 + $0x8] sm:$0xff]
    %v82 = vpack.c.bf16 %v81, %v80
    %v83 = vld [vmem:[#allocation5] sm:$0xff]
    %v84 = vld [vmem:[#allocation5 + $0x8] sm:$0xff]
    %v87 = vunpack.c.l.b16 %v83
    %v88 = vunpack.c.h.b16 %v83
    %v89 = vunpack.c.l.b16 %v84
    %v90 = vunpack.c.h.b16 %v84
    %v91 = vpack.c.b16 %v89, %v87
    %v92 = vpack.c.b16 %v90, %v88
    %vm95 = vcmask 130048
    %v97 = vsel %vm95, %v82, 0
    %99 = vmatprep.subr.bf16.mxu0 %v92
    %100 = vmatpush1.bf16.msra.mxu0 %v91
    %101 = vmatprep.subr.bf16.mxu0 0
    %102 = vmatpush1.bf16.msra.mxu0 0
    %103 = vmatprep.subr.bf16.mxu0 0
    %104 = vmatpush1.bf16.msra.mxu0 0
    %105 = vmatprep.subr.bf16.mxu0 0
    %106 = vmatpush1.bf16.msra.mxu0 0
    %107 = vmatprep.subr.bf16.mxu0 0
    %108 = vmatpush1.bf16.msra.mxu0 0
    %109 = vmatprep.subr.bf16.mxu0 0
    %110 = vmatpush1.bf16.msra.mxu0 0
    %111 = vmatprep.subr.bf16.mxu0 0
    %112 = vmatpush1.bf16.msra.mxu0 0
    %113 = vmatprep.subr.bf16.mxu0 0
    %114 = vmatpush1.bf16.msra.mxu0 0
    %115 = vmatprep.subr.bf16.mxu0 0
    %116 = vmatpush1.bf16.msra.mxu0 0
    %117 = vmatprep.subr.bf16.mxu0 0
    %118 = vmatpush1.bf16.msra.mxu0 0
    %119 = vmatprep.subr.bf16.mxu0 0
    %120 = vmatpush1.bf16.msra.mxu0 0
    %121 = vmatprep.subr.bf16.mxu0 0
    %122 = vmatpush1.bf16.msra.mxu0 0
    %123 = vmatprep.subr.bf16.mxu0 0
    %124 = vmatpush1.bf16.msra.mxu0 0
    %125 = vmatprep.subr.bf16.mxu0 0
    %126 = vmatpush1.bf16.msra.mxu0 0
    %127 = vmatprep.subr.bf16.mxu0 0
    %128 = vmatpush1.bf16.msra.mxu0 0
    %129 = vmatprep.subr.bf16.mxu0 0
    %130 = vmatpush1.bf16.msra.mxu0 0
    %131 = vmatprep.mubr.bf16.mxu0 0
    %132 = vmatmul.mubr.bf16.gmra.mrb[0].mxu0 %v97
    %v133 = vpop.f32.mrb[0].mxu0
    %v134 = vadd.f32 0.0, %v133
    %v135 = vpop.f32.mrb[0].mxu0
    %v136 = vadd.f32 0.0, %v135
    %v137 = vpop.f32.mrb[0].mxu0
    %v138 = vadd.f32 0.0, %v137
    %v139 = vpop.f32.mrb[0].mxu0
    %v140 = vadd.f32 0.0, %v139
    %141 = vdwg.mxu0
    %v142 = vpack.c.bf16 %v138, %v134
    %v143 = vld [vmem:[#allocation8] sm:$0xff]
    %v144 = vld [vmem:[#allocation8 + $0x8] sm:$0xff]
    %146 = vrot.lane.b32.xlu0 %v82, 112
    %v147 = vpop.permute.xlu0 %146
    %v149 = vsel %vm95, %v147, 0
    %151 = vmatprep.subr.bf16.mxu0 0
    %152 = vmatpush1.bf16.msra.mxu0 %v142
    %153 = vmatprep.subr.bf16.mxu0 0
    %154 = vmatpush1.bf16.msra.mxu0 0
    %155 = vmatprep.subr.bf16.mxu0 0
    %156 = vmatpush1.bf16.msra.mxu0 0
    %157 = vmatprep.subr.bf16.mxu0 0
    %158 = vmatpush1.bf16.msra.mxu0 0
    %159 = vmatprep.subr.bf16.mxu0 0
    %160 = vmatpush1.bf16.msra.mxu0 0
    %161 = vmatprep.subr.bf16.mxu0 0
    %162 = vmatpush1.bf16.msra.mxu0 0
    %163 = vmatprep.subr.bf16.mxu0 0
    %164 = vmatpush1.bf16.msra.mxu0 0
    %165 = vmatprep.subr.bf16.mxu0 0
    %166 = vmatpush1.bf16.msra.mxu0 0
    %167 = vmatprep.subr.bf16.mxu0 0
    %168 = vmatpush1.bf16.msra.mxu0 0
    %169 = vmatprep.subr.bf16.mxu0 0
    %170 = vmatpush1.bf16.msra.mxu0 0
    %171 = vmatprep.subr.bf16.mxu0 0
    %172 = vmatpush1.bf16.msra.mxu0 0
    %173 = vmatprep.subr.bf16.mxu0 0
    %174 = vmatpush1.bf16.msra.mxu0 0
    %175 = vmatprep.subr.bf16.mxu0 0
    %176 = vmatpush1.bf16.msra.mxu0 0
    %177 = vmatprep.subr.bf16.mxu0 0
    %178 = vmatpush1.bf16.msra.mxu0 0
    %179 = vmatprep.subr.bf16.mxu0 0
    %180 = vmatpush1.bf16.msra.mxu0 0
    %181 = vmatprep.subr.bf16.mxu0 0
    %182 = vmatpush1.bf16.msra.mxu0 0
    %183 = vmatprep.mubr.bf16.mxu0 0
    %184 = vmatmul.mubr.bf16.gmra.mrb[0].mxu0 %v149
    %v185 = vpop.f32.mrb[0].mxu0
    %v186 = vadd.f32 %v143, %v185
    %v187 = vpop.f32.mrb[0].mxu0
    %v188 = vpop.f32.mrb[0].mxu0
    %v189 = vadd.f32 %v144, %v188
    %v190 = vpop.f32.mrb[0].mxu0
    %191 = vdwg.mxu0
    %v192 = vmul.f32 %v186, %v186
    %v193 = vmul.f32 %v189, %v189
    %194 = vadd.xlane.f32.xlu0 %v192
    %v195 = vpop.xlane.xlu0 %194
    %196 = vadd.xlane.f32.xlu0 %v193
    %v197 = vpop.xlane.xlu0 %196
    %v198 = vmax.f32 %v195, 1e-24
    %v199 = vmax.f32 %v197, 1e-24
    %v200 = vrsqrt.pop %v198
    %v201 = vrsqrt.pop %v199
    %v202 = vmul.f32 %v186, %v200
    %v203 = vmul.f32 %v189, %v201
    %v204 = vld [vmem:[%s3] sm:$0x1]
    %v205 = vld [vmem:[%s3 + $0x1] sm:$0x1]
    %v206 = vld [vmem:[%s3 + $0x2] sm:$0x1]
    %v207 = vld [vmem:[%s3 + $0x3] sm:$0x1]
    %v208 = vlaneseq
    %v209 = vshrl.u32 %v208, 7
    %v210 = vsub.s32 0, %v209
    %v211 = vrot.slane %v204, %v210
    %v212 = vadd.f32 %v136, %v211
    %v213 = vadd.f32 %v140, %v211
    %v214 = vadd.f32 %v212, %v213
    %v215 = vrot.slane %v214, 4
    %v216 = vadd.f32 %v214, %v215
    %v217 = vrot.slane %v216, 2
    %v218 = vadd.f32 %v216, %v217
    %v219 = vrot.slane %v218, 1
    %v220 = vadd.f32 %v218, %v219
    %v221 = vmul.f32 %v212, %v212
    %v222 = vmul.f32 %v213, %v213
    %v223 = vadd.f32 %v221, %v222
    %v224 = vrot.slane %v223, 4
    %v225 = vadd.f32 %v223, %v224
    %v226 = vrot.slane %v225, 2
    %v227 = vadd.f32 %v225, %v226
    %v228 = vrot.slane %v227, 1
    %v229 = vadd.f32 %v227, %v228
    %v230 = vmul.f32 %v220, 0.0625
    %v231 = vmul.f32 %v229, 0.0625
    %v232 = vmul.f32 %v230, %v230
    %v233 = vsub.f32 %v231, %v232
    %v234 = vmax.f32 %v233, 0.0
    %v235 = vsub.f32 %v212, %v230
    %v236 = vsub.f32 %v213, %v230
    %v237 = vadd.f32 %v234, 1e-05
    %v238 = vrsqrt.pop %v237
    %v239 = vmul.f32 %v235, %v238
    %v240 = vmul.f32 %v236, %v238
    %v241 = vlaneseq
    %v242 = vshrl.u32 %v241, 7
    %v243 = vsub.s32 0, %v242
    %v244 = vrot.slane %v205, %v243
    %v245 = vmul.f32 %v239, %v244
    %v246 = vmul.f32 %v240, %v244
    %v247 = vlaneseq
    %v248 = vshrl.u32 %v247, 7
    %v249 = vsub.s32 0, %v248
    %v250 = vrot.slane %v206, %v249
    %v251 = vadd.f32 %v245, %v250
    %v252 = vadd.f32 %v246, %v250
    %v253 = vmax.f32 %v251, 0.0
    %v254 = vmax.f32 %v252, 0.0
    %v255 = vpack.c.bf16 %v254, %v253
    %v256 = vld [vmem:[#allocation7] sm:$0xf]
    %v257 = vld [vmem:[#allocation7 + $0x4] sm:$0xf]
    %v258 = vld [vmem:[#allocation7 + $0x8] sm:$0xf]
    %v259 = vld [vmem:[#allocation7 + $0xc] sm:$0xf]
    %v260 = vlaneseq
    %v261 = vshrl.u32 %v260, 7
    %v262 = vsub.s32 0, %v261
    %v263 = vrot.slane %v207, %v262
    %v268 = vunpack.c.l.b16 %v256
    %v269 = vunpack.c.l.b16 %v257
    %v270 = vunpack.c.l.b16 %v258
    %v271 = vunpack.c.l.b16 %v259
    %v272 = vpack.c.b16 %v269, %v268
    %v273 = vpack.c.b16 %v271, %v270
    %vm276 = vcmask 261120
    %v278 = vsel %vm276, %v255, 0
    %280 = vmatprep.subr.bf16.mxu0 0
    %281 = vmatpush1.bf16.msra.mxu0 %v272
    %282 = vmatprep.subr.bf16.mxu0 0
    %283 = vmatpush1.bf16.msra.mxu0 %v273
    %284 = vmatprep.subr.bf16.mxu0 0
    %285 = vmatpush1.bf16.msra.mxu0 0
    %286 = vmatprep.subr.bf16.mxu0 0
    %287 = vmatpush1.bf16.msra.mxu0 0
    %288 = vmatprep.subr.bf16.mxu0 0
    %289 = vmatpush1.bf16.msra.mxu0 0
    %290 = vmatprep.subr.bf16.mxu0 0
    %291 = vmatpush1.bf16.msra.mxu0 0
    %292 = vmatprep.subr.bf16.mxu0 0
    %293 = vmatpush1.bf16.msra.mxu0 0
    %294 = vmatprep.subr.bf16.mxu0 0
    %295 = vmatpush1.bf16.msra.mxu0 0
    %296 = vmatprep.subr.bf16.mxu0 0
    %297 = vmatpush1.bf16.msra.mxu0 0
    %298 = vmatprep.subr.bf16.mxu0 0
    %299 = vmatpush1.bf16.msra.mxu0 0
    %300 = vmatprep.subr.bf16.mxu0 0
    %301 = vmatpush1.bf16.msra.mxu0 0
    %302 = vmatprep.subr.bf16.mxu0 0
    %303 = vmatpush1.bf16.msra.mxu0 0
    %304 = vmatprep.subr.bf16.mxu0 0
    %305 = vmatpush1.bf16.msra.mxu0 0
    %306 = vmatprep.subr.bf16.mxu0 0
    %307 = vmatpush1.bf16.msra.mxu0 0
    %308 = vmatprep.subr.bf16.mxu0 0
    %309 = vmatpush1.bf16.msra.mxu0 0
    %310 = vmatprep.subr.bf16.mxu0 0
    %311 = vmatpush1.bf16.msra.mxu0 0
    %312 = vmatprep.mubr.bf16.mxu0 0
    %313 = vmatmul.mubr.bf16.gmra.mrb[0].mxu0 %v278
    %v314 = vpop.f32.mrb[0].mxu0
    %v315 = vadd.f32 %v263, %v314
    %v316 = vpop.f32.mrb[0].mxu0
    %v317 = vpop.f32.mrb[0].mxu0
    %v318 = vadd.f32 %v263, %v317
    %v319 = vpop.f32.mrb[0].mxu0
    %320 = vdwg.mxu0
    %v321 = vmul.f32 %v315, %v315
    %v322 = vmul.f32 %v318, %v318
    %323 = vadd.xlane.f32.xlu0 %v321
    %v324 = vpop.xlane.xlu0 %323
    %325 = vadd.xlane.f32.xlu0 %v322
    %v326 = vpop.xlane.xlu0 %325
    %v327 = vmax.f32 %v324, 1e-24
    %v328 = vmax.f32 %v326, 1e-24
    %v329 = vrsqrt.pop %v327
    %v330 = vrsqrt.pop %v328
    %v331 = vmul.f32 %v315, %v329
    %v332 = vmul.f32 %v318, %v330
    %333 = vst [vmem:[#allocation10] sm:$0xff] %v331
    %334 = vst [vmem:[#allocation10 + $0x8] sm:$0xff] %v332
    %v335 = vpack.c.bf16 %v332, %v331
    %v336 = vpack.c.bf16 %v203, %v202
    %337 = vmatprep.subr.bf16.mxu0 0
    %338 = vmatpush1.bf16.xpose.msra.mxu0 %v336
    %339 = vmatprep.subr.bf16.mxu0 0
    %340 = vmatpush1.bf16.xpose.msra.mxu0 0
    %341 = vmatprep.subr.bf16.mxu0 0
    %342 = vmatpush1.bf16.xpose.msra.mxu0 0
    %343 = vmatprep.subr.bf16.mxu0 0
    %344 = vmatpush1.bf16.xpose.msra.mxu0 0
    %345 = vmatprep.subr.bf16.mxu0 0
    %346 = vmatpush1.bf16.xpose.msra.mxu0 0
    %347 = vmatprep.subr.bf16.mxu0 0
    %348 = vmatpush1.bf16.xpose.msra.mxu0 0
    %349 = vmatprep.subr.bf16.mxu0 0
    %350 = vmatpush1.bf16.xpose.msra.mxu0 0
    %351 = vmatprep.subr.bf16.mxu0 0
    %352 = vmatpush1.bf16.xpose.msra.mxu0 0
    %353 = vmatprep.subr.bf16.mxu0 0
    %354 = vmatpush1.bf16.xpose.msra.mxu0 0
    %355 = vmatprep.subr.bf16.mxu0 0
    %356 = vmatpush1.bf16.xpose.msra.mxu0 0
    %357 = vmatprep.subr.bf16.mxu0 0
    %358 = vmatpush1.bf16.xpose.msra.mxu0 0
    %359 = vmatprep.subr.bf16.mxu0 0
    %360 = vmatpush1.bf16.xpose.msra.mxu0 0
    %361 = vmatprep.subr.bf16.mxu0 0
    %362 = vmatpush1.bf16.xpose.msra.mxu0 0
    %363 = vmatprep.subr.bf16.mxu0 0
    %364 = vmatpush1.bf16.xpose.msra.mxu0 0
    %365 = vmatprep.subr.bf16.mxu0 0
    %366 = vmatpush1.bf16.xpose.msra.mxu0 0
    %367 = vmatprep.subr.bf16.mxu0 0
    %368 = vmatpush1.bf16.xpose.msra.mxu0 0
    %369 = vmatprep.mubr.bf16.mxu0 0
    %370 = vmatmul.mubr.bf16.gmra.mrb[0].mxu0 %v335
    %v371 = vpop.f32.mrb[0].mxu0
    %v372 = vadd.f32 0.0, %v371
    %v373 = vpop.f32.mrb[0].mxu0
    %v374 = vpop.f32.mrb[0].mxu0
    %v375 = vadd.f32 0.0, %v374
    %v376 = vpop.f32.mrb[0].mxu0
    %377 = vdwg.mxu0
    %v378 = vmul.f32 %v372, 2.0
    %v379 = vmul.f32 %v375, 2.0
    %v380 = vmul.f32 %v378, 1.442695
    %v381 = vpow.pop %v380
    %v382 = vmul.f32 %v379, 1.442695
    %v383 = vpow.pop %v382
    %386 = vrot.lane.b32.xlu0 %v381, 32
    %v387 = vpop.permute.xlu0 %386
    %388 = vrot.lane.b32.xlu0 %v383, 32
    %v389 = vpop.permute.xlu0 %388
    %v392 = vmul.f32 %v80, %v387
    %v393 = vmul.f32 %v81, %v389
    %396 = vrot.lane.b32.xlu0 %v392, 96
    %v397 = vpop.permute.xlu0 %396
    %398 = vrot.lane.b32.xlu0 %v393, 96
    %v399 = vpop.permute.xlu0 %398
    %v402 = vsel %vm95, %v397, 0.0
    %403 = vadd.xlane.f32.xlu0 %v402
    %v404 = vpop.xlane.xlu0 %403
    %v405 = vsel %vm95, %v399, 0.0
    %406 = vadd.xlane.f32.xlu0 %v405
    %v407 = vpop.xlane.xlu0 %406
    %408 = vrot.lane.b32.xlu0 %v381, 48
    %v409 = vpop.permute.xlu0 %408
    %410 = vrot.lane.b32.xlu0 %v383, 48
    %v411 = vpop.permute.xlu0 %410
    %v414 = vmul.f32 %v80, %v409
    %v415 = vmul.f32 %v81, %v411
    %418 = vrot.lane.b32.xlu0 %v414, 80
    %v419 = vpop.permute.xlu0 %418
    %420 = vrot.lane.b32.xlu0 %v415, 80
    %v421 = vpop.permute.xlu0 %420
    %v424 = vsel %vm95, %v419, 0.0
    %425 = vadd.xlane.f32.xlu0 %v424
    %v426 = vpop.xlane.xlu0 %425
    %v427 = vsel %vm95, %v421, 0.0
    %428 = vadd.xlane.f32.xlu0 %v427
    %v429 = vpop.xlane.xlu0 %428
    %v430 = vlog2.pop %v426
    %v431 = vmul.f32 %v430, 0.6931472
    %v432 = vlog2.pop %v429
    %v433 = vmul.f32 %v432, 0.6931472
    %v434 = vlog2.pop %v404
    %v435 = vmul.f32 %v434, 0.6931472
    %v436 = vlog2.pop %v407
    %v437 = vmul.f32 %v436, 0.6931472
    %v438 = vsub.f32 %v431, %v435
    %v439 = vsub.f32 %v433, %v437
    %vm440 = vcmask 7168
    %v441 = vsel %vm440, %v438, 0.0
    %v442 = vsel %vm440, %v439, 0.0
    %v443 = vadd.f32 %v441, %v442
    %444 = vadd.xlane.f32.xlu0 %v443
    %v445 = vpop.xlane.xlu0 %444
    %v446 = vrot.slane %v445, 4
    %v447 = vadd.f32 %v445, %v446
    %v448 = vrot.slane %v447, 2
    %v449 = vadd.f32 %v447, %v448
    %v450 = vrot.slane %v449, 1
    %v451 = vadd.f32 %v449, %v450
    %s452 = vtos %v451
    %v453 = vstv %s452
    %v454 = vrcp.pop 16.0
    %v455 = vmul.f32 %v453, %v454
    %vm456 = vcmask 0
    %457 = vst.msk [vmem:[#allocation11] sm:$0x1] %vm456, %v455
    // Predicated region
    $region38: #{fused_forward.1} parent=1 // pred_check
      _
    $region39: #{fused_forward.1} parent=1 // pred_check_branch
      %459 = sbr.rel (0) target = $region41
    $region40: #{fused_forward.1} parent=1 // pred_region
      %s461 = ssub.s32 256, 256
      %462 = vsyncadd [#allocation4], %s461
      %s463 = sshll.u32 [#allocation10], 4
      %s464 = int_to_ptr.vmem [resolvable:$true] %s463
      %469 = dma.vmem_to_hbm [thread:$0]  %s464, 256, %s5, [#allocation4], 128, 128, 8
    $region41: #{fused_forward.1} parent=1 // pred_fallthru
      _
    // Predicated region
    $region42: #{fused_forward.1} parent=1 // pred_check
      _
    $region43: #{fused_forward.1} parent=1 // pred_check_branch
      %471 = sbr.rel (0) target = $region45
    $region44: #{fused_forward.1} parent=1 // pred_region
      %s473 = ssub.s32 16, 16
      %474 = vsyncadd [#allocation12], %s473
      %s476 = sshll.u32 [#allocation11], 4
      %s477 = int_to_ptr.vmem [resolvable:$true] %s476
      %479 = dma.vmem_to_hbm [thread:$0]  %s477, 16, %s6, [#allocation12]
    $region45: #{fused_forward.1} parent=1 // pred_fallthru
      _
    // Predicated region
    $region46: #{fused_forward.1} parent=1 // pred_check
      _
    $region47: #{fused_forward.1} parent=1 // pred_check_branch
      %481 = sbr.rel (0) target = $region49
    $region48: #{fused_forward.1} parent=1 // pred_region
      %482 = dma.done [#allocation4], 256
    $region49: #{fused_forward.1} parent=1 // pred_fallthru
      _
    // Predicated region
    $region50: #{fused_forward.1} parent=1 // pred_check
      _
    $region51: #{fused_forward.1} parent=1 // pred_check_branch
      %484 = sbr.rel (0) target = $region53
    $region52: #{fused_forward.1} parent=1 // pred_region
      %485 = dma.done [#allocation12], 16
    $region53: #{fused_forward.1} parent=1 // pred_fallthru
      _
    %486 = vsyncpa [#allocation3], 1
    %487 = vsyncpa [#allocation6], 1
    %488 = vsyncpa [#allocation9], 1
    %489 = vsyncpa [#allocation4], 1
    %490 = vsyncpa [#allocation12], 1

</llo_original>
